<compile_context>
chip_gen: v5e
topology: v5e:2x2
jax: 0.10.0
libtpu: 0.0.40
codegen_flags: <defaults>
</compile_context>

<pallas_src>
import functools

import jax
import jax.numpy as jnp
from jax import lax
from jax.experimental import pallas as pl
from jax.experimental.pallas import tpu as pltpu


def _channel_attention_kernel(x_ref, w1t_ref, w2t_ref, o_ref, sum_sc, max_sc,
                              *, inv_hw, valid_last, padded):
    # x_ref:   (1, C, ct, 128)  VMEM   current spatial tile of one batch slab
    # w1t_ref: (C, Cr)          VMEM   fc1 weight, pre-transposed (in, out)
    # w2t_ref: (Cr, C)          VMEM   fc2 weight, pre-transposed (in, out)
    # o_ref:   (1, 1, C)        VMEM   sigmoid channel attention for this batch
    # sum_sc:  (C, 128) f32     VMEM   running lane-wise sum accumulator
    # max_sc:  (C, 128) f32     VMEM   running lane-wise max accumulator
    t = pl.program_id(1)
    n_t = pl.num_programs(1)

    @pl.when(t == 0)
    def _init():
        sum_sc[...] = jnp.zeros_like(sum_sc)
        max_sc[...] = jnp.full_like(max_sc, -jnp.inf)

    xf = x_ref[0].astype(jnp.float32)                    # (C, ct, 128)
    ct = xf.shape[1]

    # Hot loop: elementwise VPU add/max folded over the chunk axis only; no
    # 128-lane reduce, no 1-D relayout per step.
    sum_sc[...] += jnp.sum(xf, axis=1)                   # zero-pad is harmless

    if padded:
        # Zero-padded tail lanes must not contaminate the max path.
        pos = (lax.broadcasted_iota(jnp.int32, (ct, 128), 0) * 128
               + lax.broadcasted_iota(jnp.int32, (ct, 128), 1))
        valid = jnp.where(t == n_t - 1, valid_last, ct * 128)
        xf_max = jnp.where((pos < valid)[None, :, :], xf, -jnp.inf)
    else:
        xf_max = xf
    max_sc[...] = jnp.maximum(max_sc[...], jnp.max(xf_max, axis=1))

    @pl.when(t == n_t - 1)
    def _finalize():
        # Single cross-lane reduce + relayout + fused 2-row MLP, once per slab.
        avg = jnp.sum(sum_sc[...], axis=1) * jnp.float32(inv_hw)   # (C,)
        mx = jnp.max(max_sc[...], axis=1)                          # (C,)
        pooled = jnp.stack([avg, mx], axis=0)                      # (2, C)

        w1t = w1t_ref[...].astype(jnp.float32)                     # (C, Cr)
        w2t = w2t_ref[...].astype(jnp.float32)                     # (Cr, C)

        h = jnp.maximum(
            jnp.dot(pooled, w1t, preferred_element_type=jnp.float32), 0.0)  # (2, Cr)
        o2 = jnp.dot(h, w2t, preferred_element_type=jnp.float32)            # (2, C)
        ca = jax.nn.sigmoid(o2[0:1, :] + o2[1:2, :])                        # (1, C)
        o_ref[...] = ca[None, :, :].astype(o_ref.dtype)                     # (1, 1, C)


def channel_attention(x, w1_fc, w2_fc, *, target_block_bytes=8 << 20):
    """x: (N, C, H, W); w1_fc: (Cr, C) fc1 weight; w2_fc: (C, Cr) fc2 weight.
    Returns sigmoid channel attention of shape (N, C, 1, 1)."""
    N, C, H, W = x.shape
    Cr = w1_fc.shape[0]
    HW = H * W

    # ---- spatial tile selection (dtype-aware, lane-dense, 128-padded) ----
    itemsize = jnp.dtype(x.dtype).itemsize
    n_chunks = pl.cdiv(HW, 128)                       # 128-lane chunks
    bytes_per_chunk = itemsize * C * 128
    max_chunks = max(1, target_block_bytes // bytes_per_chunk)
    if n_chunks <= max_chunks:
        chunk_tile = n_chunks                         # whole slab in one block
    else:
        # multi-tile: sublane dim of the block must be a multiple of 8
        chunk_tile = max(8, (min(max_chunks, n_chunks) // 8) * 8)
    num_t = pl.cdiv(n_chunks, chunk_tile)
    hw_tile = chunk_tile * 128
    HW_pad = num_t * hw_tile
    pad = HW_pad - HW
    valid_last = HW - (num_t - 1) * hw_tile           # valid elems in last tile

    x3 = x.reshape(N, C, HW)                          # free, contiguous
    if pad:
        x3 = jnp.pad(x3, ((0, 0), (0, 0), (0, pad)))  # zeros; max path is masked
    x4 = x3.reshape(N, C, num_t * chunk_tile, 128)

    w1t = jnp.transpose(w1_fc)                        # (C, Cr)
    w2t = jnp.transpose(w2_fc)                        # (Cr, C)

    block_bytes = itemsize * C * chunk_tile * 128
    vmem_limit = int(min(64 << 20, max(32 << 20, 3 * block_bytes)))

    kernel = functools.partial(
        _channel_attention_kernel,
        inv_hw=1.0 / float(HW),
        valid_last=int(valid_last),
        padded=(pad > 0))

    out = pl.pallas_call(
        kernel,
        out_shape=jax.ShapeDtypeStruct((N, 1, C), x.dtype),
        grid=(N, num_t),
        in_specs=[
            pl.BlockSpec((1, C, chunk_tile, 128), lambda n, t: (n, 0, t, 0)),
            pl.BlockSpec((C, Cr), lambda n, t: (0, 0)),
            pl.BlockSpec((Cr, C), lambda n, t: (0, 0)),
        ],
        out_specs=pl.BlockSpec((1, 1, C), lambda n, t: (n, 0, 0)),
        scratch_shapes=[pltpu.VMEM((C, 128), jnp.float32),
                        pltpu.VMEM((C, 128), jnp.float32)],
        compiler_params=pltpu.CompilerParams(
            dimension_semantics=("parallel", "arbitrary"),
            vmem_limit_bytes=vmem_limit),
    )(x4, w1t, w2t)

    return out.reshape(N, C, 1, 1)


def channel_attention_ref(x, w1_fc, w2_fc):
    """Pure-JAX reference mirroring the PyTorch ChannelAttention forward."""
    avg = jnp.mean(x, axis=(2, 3), keepdims=True)     # (N, C, 1, 1)
    mx = jnp.max(x, axis=(2, 3), keepdims=True)       # (N, C, 1, 1)

    def mlp(v):
        h = jnp.einsum('rc,ncij->nrij', w1_fc, v)
        h = jnp.maximum(h, 0.0)
        return jnp.einsum('cr,nrij->ncij', w2_fc, h)

    return jax.nn.sigmoid(mlp(avg) + mlp(mx))


if __name__ == "__main__":
    key = jax.random.PRNGKey(0)
    kx, k1, k2, kx2, kx3 = jax.random.split(key, 5)

    N, C, H, W, ratio = 2, 16, 16, 16, 8
    Cr = C // ratio

    x = jax.random.normal(kx, (N, C, H, W), jnp.float32)
    # nn.Conv2d 1x1 weights (bias=False), squeezed to 2-D (out, in).
    w1_fc = 0.3 * jax.random.normal(k1, (Cr, C), jnp.float32)
    w2_fc = 0.3 * jax.random.normal(k2, (C, Cr), jnp.float32)

    ref = channel_attention_ref(x, w1_fc, w2_fc)
    out = jax.block_until_ready(channel_attention(x, w1_fc, w2_fc))
    assert out.shape == (N, C, 1, 1)
    err = float(jnp.max(jnp.abs(out - ref)))
    assert jnp.allclose(out, ref, atol=1e-5, rtol=1e-5), f"max abs err {err}"

    # Multi-tile spatial reduction with a padded last tile (HW=2304 -> 3 tiles
    # of 1024 lanes): exercises the accumulator across the "arbitrary" axis.
    x_big = jax.random.normal(kx2, (N, C, 48, 48), jnp.float32)
    ref_big = channel_attention_ref(x_big, w1_fc, w2_fc)
    out_big = jax.block_until_ready(
        channel_attention(x_big, w1_fc, w2_fc, target_block_bytes=64 * 1024))
    err_big = float(jnp.max(jnp.abs(out_big - ref_big)))
    assert jnp.allclose(out_big, ref_big, atol=1e-5, rtol=1e-5), f"err {err_big}"

    # Non-128-aligned spatial size with all-negative data: exercises the -inf
    # masking of zero-padded lanes in the max-pool path.
    x_neg = jax.random.normal(kx3, (N, C, 10, 10), jnp.float32) - 5.0
    ref_neg = channel_attention_ref(x_neg, w1_fc, w2_fc)
    out_neg = jax.block_until_ready(channel_attention(x_neg, w1_fc, w2_fc))
    err_neg = float(jnp.max(jnp.abs(out_neg - ref_neg)))
    assert jnp.allclose(out_neg, ref_neg, atol=1e-5, rtol=1e-5), f"err {err_neg}"

    print("KERNEL_OK")
</pallas_src>

<mosaic_0001>
module attributes {stable_mosaic.version = 11 : i64} {
  func.func @_channel_attention_kernel(%arg0: i32, %arg1: i32, %arg2: memref<1x16x2x128xf32, #tpu.memory_space<vmem>>, %arg3: memref<16x2xf32, #tpu.memory_space<vmem>>, %arg4: memref<2x16xf32, #tpu.memory_space<vmem>>, %arg5: memref<1x1x16xf32, #tpu.memory_space<vmem>>, %arg6: memref<16x128xf32, #tpu.memory_space<vmem>>, %arg7: memref<16x128xf32, #tpu.memory_space<vmem>>) attributes {dimension_semantics = [#tpu.dimension_semantics<parallel>, #tpu.dimension_semantics<arbitrary>], iteration_bounds = array<i64: 2, 1>, scalar_prefetch = 0 : i64, scratch_operands = 2 : i64, tpu.core_type = #tpu.core_type<tc>, window_params = [{transform_indices = @transform_0, window_bounds = array<i64: 1, 16, 2, 128>}, {pipeline_mode = #tpu.pipeline_mode<synchronous>, transform_indices = @transform_1, window_bounds = array<i64: 16, 2>}, {pipeline_mode = #tpu.pipeline_mode<synchronous>, transform_indices = @transform_2, window_bounds = array<i64: 2, 16>}, {transform_indices = @transform_3, window_bounds = array<i64: 1, 1, 16>}]} {
    %c0_i32 = arith.constant 0 : i32
    %0 = arith.cmpi eq, %arg1, %c0_i32 : i32
    %1 = arith.extui %0 : i1 to i32
    %c0_i32_0 = arith.constant 0 : i32
    %2 = arith.cmpi ne, %1, %c0_i32_0 : i32
    scf.if %2 {
      %cst_15 = arith.constant 0.000000e+00 : f32
      %16 = vector.broadcast %cst_15 : f32 to vector<16x128xf32>
      %c0_16 = arith.constant 0 : index
      %c0_17 = arith.constant 0 : index
      %17 = vector.load %arg6[%c0_16, %c0_17] : memref<16x128xf32, #tpu.memory_space<vmem>>, vector<16x128xf32>
      tpu.vector_store %arg6[%c0_16, %c0_17], %16 {strides = array<i32>} : memref<16x128xf32, #tpu.memory_space<vmem>>, vector<16x128xf32>,
      %cst_18 = arith.constant 0xFF800000 : f32
      %18 = vector.broadcast %cst_18 : f32 to vector<16x128xf32>
      %c0_19 = arith.constant 0 : index
      %c0_20 = arith.constant 0 : index
      %19 = vector.load %arg7[%c0_19, %c0_20] : memref<16x128xf32, #tpu.memory_space<vmem>>, vector<16x128xf32>
      tpu.vector_store %arg7[%c0_19, %c0_20], %18 {strides = array<i32>} : memref<16x128xf32, #tpu.memory_space<vmem>>, vector<16x128xf32>,
    } else {
    }
    %c0 = arith.constant 0 : index
    %c0_1 = arith.constant 0 : index
    %c0_2 = arith.constant 0 : index
    %c0_3 = arith.constant 0 : index
    %3 = vector.load %arg2[%c0, %c0_1, %c0_2, %c0_3] : memref<1x16x2x128xf32, #tpu.memory_space<vmem>>, vector<1x16x2x128xf32>
    %4 = vector.shape_cast %3 : vector<1x16x2x128xf32> to vector<16x2x128xf32>
    %c0_4 = arith.constant 0 : index
    %c0_5 = arith.constant 0 : index
    %5 = vector.load %arg6[%c0_4, %c0_5] : memref<16x128xf32, #tpu.memory_space<vmem>>, vector<16x128xf32>
    %cst = arith.constant dense<0.000000e+00> : vector<16x128xf32>
    %6 = vector.multi_reduction <add>, %4, %cst [1] : vector<16x2x128xf32> to vector<16x128xf32>
    %7 = arith.addf %5, %6 : vector<16x128xf32>
    %c0_6 = arith.constant 0 : index
    %c0_7 = arith.constant 0 : index
    %8 = vector.load %arg6[%c0_6, %c0_7] : memref<16x128xf32, #tpu.memory_space<vmem>>, vector<16x128xf32>
    tpu.vector_store %arg6[%c0_6, %c0_7], %7 {strides = array<i32>} : memref<16x128xf32, #tpu.memory_space<vmem>>, vector<16x128xf32>,
    %c0_8 = arith.constant 0 : index
    %c0_9 = arith.constant 0 : index
    %9 = vector.load %arg7[%c0_8, %c0_9] : memref<16x128xf32, #tpu.memory_space<vmem>>, vector<16x128xf32>
    %cst_10 = arith.constant dense<0xFF800000> : vector<16x128xf32>
    %10 = vector.multi_reduction <maximumf>, %4, %cst_10 [1] : vector<16x2x128xf32> to vector<16x128xf32>
    %11 = arith.maximumf %9, %10 : vector<16x128xf32>
    %c0_11 = arith.constant 0 : index
    %c0_12 = arith.constant 0 : index
    %12 = vector.load %arg7[%c0_11, %c0_12] : memref<16x128xf32, #tpu.memory_space<vmem>>, vector<16x128xf32>
    tpu.vector_store %arg7[%c0_11, %c0_12], %11 {strides = array<i32>} : memref<16x128xf32, #tpu.memory_space<vmem>>, vector<16x128xf32>,
    %c0_i32_13 = arith.constant 0 : i32
    %13 = arith.cmpi eq, %arg1, %c0_i32_13 : i32
    %14 = arith.extui %13 : i1 to i32
    %c0_i32_14 = arith.constant 0 : i32
    %15 = arith.cmpi ne, %14, %c0_i32_14 : i32
    scf.if %15 {
      %c0_15 = arith.constant 0 : index
      %c0_16 = arith.constant 0 : index
      %16 = vector.load %arg6[%c0_15, %c0_16] : memref<16x128xf32, #tpu.memory_space<vmem>>, vector<16x128xf32>
      %cst_17 = arith.constant dense<0.000000e+00> : vector<16xf32>
      %17 = vector.multi_reduction <add>, %16, %cst_17 [1] : vector<16x128xf32> to vector<16xf32>
      %cst_18 = arith.constant 3.906250e-03 : f32
      %18 = vector.broadcast %cst_18 : f32 to vector<16xf32>
      %19 = arith.mulf %17, %18 : vector<16xf32>
      %c0_19 = arith.constant 0 : index
      %c0_20 = arith.constant 0 : index
      %20 = vector.load %arg7[%c0_19, %c0_20] : memref<16x128xf32, #tpu.memory_space<vmem>>, vector<16x128xf32>
      %cst_21 = arith.constant dense<0xFF800000> : vector<16xf32>
      %21 = vector.multi_reduction <maximumf>, %20, %cst_21 [1] : vector<16x128xf32> to vector<16xf32>
      %22 = vector.shape_cast %19 : vector<16xf32> to vector<1x16xf32>
      %23 = vector.shape_cast %21 : vector<16xf32> to vector<1x16xf32>
      %24 = tpu.concatenate %22, %23 in 0 : vector<1x16xf32>, vector<1x16xf32> -> vector<2x16xf32>
      %c0_22 = arith.constant 0 : index
      %c0_23 = arith.constant 0 : index
      %25 = vector.load %arg3[%c0_22, %c0_23] : memref<16x2xf32, #tpu.memory_space<vmem>>, vector<16x2xf32>
      %c0_24 = arith.constant 0 : index
      %c0_25 = arith.constant 0 : index
      %26 = vector.load %arg4[%c0_24, %c0_25] : memref<2x16xf32, #tpu.memory_space<vmem>>, vector<2x16xf32>
      %cst_26 = arith.constant dense<0.000000e+00> : vector<2x2xf32>
      %27 = tpu.matmul %24, %25, %cst_26 {dimension_numbers = #tpu.dot_dimension_numbers<[1], [0], [0], [1], [0, 0, 1, 1], [], []>} : vector<2x16xf32>, vector<16x2xf32>, vector<2x2xf32> -> vector<2x2xf32>
      %cst_27 = arith.constant 0.000000e+00 : f32
      %28 = vector.broadcast %cst_27 : f32 to vector<2x2xf32>
      %29 = arith.maximumf %27, %28 : vector<2x2xf32>
      %cst_28 = arith.constant dense<0.000000e+00> : vector<2x16xf32>
      %30 = tpu.matmul %29, %26, %cst_28 {dimension_numbers = #tpu.dot_dimension_numbers<[1], [0], [0], [1], [0, 0, 1, 1], [], []>} : vector<2x2xf32>, vector<2x16xf32>, vector<2x16xf32> -> vector<2x16xf32>
      %31 = vector.extract_strided_slice %30 {offsets = [0, 0], sizes = [1, 16], strides = [1, 1]} : vector<2x16xf32> to vector<1x16xf32>
      %32 = vector.extract_strided_slice %30 {offsets = [1, 0], sizes = [1, 16], strides = [1, 1]} : vector<2x16xf32> to vector<1x16xf32>
      %33 = arith.addf %31, %32 : vector<1x16xf32>
      %34 = arith.negf %33 : vector<1x16xf32>
      %35 = math.exp %34 : vector<1x16xf32>
      %cst_29 = arith.constant 1.000000e+00 : f32
      %36 = vector.broadcast %cst_29 : f32 to vector<1x16xf32>
      %37 = arith.addf %36, %35 : vector<1x16xf32>
      %38 = arith.divf %36, %37 : vector<1x16xf32>
      %39 = vector.shape_cast %38 : vector<1x16xf32> to vector<1x1x16xf32>
      %c0_30 = arith.constant 0 : index
      %c0_31 = arith.constant 0 : index
      %c0_32 = arith.constant 0 : index
      %40 = vector.load %arg5[%c0_30, %c0_31, %c0_32] : memref<1x1x16xf32, #tpu.memory_space<vmem>>, vector<1x1x16xf32>
      tpu.vector_store %arg5[%c0_30, %c0_31, %c0_32], %39 {strides = array<i32>} : memref<1x1x16xf32, #tpu.memory_space<vmem>>, vector<1x1x16xf32>,
    } else {
    }
    return
  }
  func.func @transform_0(%arg0: i32, %arg1: i32) -> (i32, i32, i32, i32) {
    %c0_i32 = arith.constant 0 : i32
    %c0_i32_0 = arith.constant 0 : i32
    %c0_i32_1 = arith.constant 0 : i32
    return %arg0, %c0_i32, %arg1, %c0_i32_0 : i32, i32, i32, i32
  }
  func.func @transform_1(%arg0: i32, %arg1: i32) -> (i32, i32) {
    %c0_i32 = arith.constant 0 : i32
    %c0_i32_0 = arith.constant 0 : i32
    %c0_i32_1 = arith.constant 0 : i32
    return %c0_i32, %c0_i32_0 : i32, i32
  }
  func.func @transform_2(%arg0: i32, %arg1: i32) -> (i32, i32) {
    %c0_i32 = arith.constant 0 : i32
    %c0_i32_0 = arith.constant 0 : i32
    %c0_i32_1 = arith.constant 0 : i32
    return %c0_i32, %c0_i32_0 : i32, i32
  }
  func.func @transform_3(%arg0: i32, %arg1: i32) -> (i32, i32, i32) {
    %c0_i32 = arith.constant 0 : i32
    %c0_i32_0 = arith.constant 0 : i32
    %c0_i32_1 = arith.constant 0 : i32
    return %arg0, %c0_i32, %c0_i32_0 : i32, i32, i32
  }
}

</mosaic_0001>

<llo_original>
// kernel: tpu_custom_call.1
$region0: #{tpu_custom_call.1}
  #allocation0 [shape = 'u32[]', space=smem, size = 0x4, offset = 0x4, fixed_abs, tag = 'smem constant byte address 0x4 - core index']
  #allocation1 [shape = 'u32[72,128]{1,0:T(1,128)}', space=vmem, size = 0x9000, scoped, tag = 'internal scratch']
  #allocation2 [shape = 'f32[16,128]{1,0:T(8,128)}', space=vmem, size = 0x2000, scoped, tag = 'scratch operand']
  #allocation3 [shape = 'f32[16,128]{1,0:T(8,128)}', space=vmem, size = 0x2000, scoped, tag = 'scratch operand']
  %s0 = inlined_call_operand.hbm [shape: f32[2,16,2,128], index: 0, kind: input, shape index: {}]
  %s1 = inlined_call_operand.vmem [shape: f32[16,2], index: 1, kind: input, shape index: {}]
  %s2 = inlined_call_operand.vmem [shape: f32[2,16], index: 2, kind: input, shape index: {}]
  %s3 = inlined_call_operand.hbm [shape: f32[2,1,16], index: 3, kind: output, shape index: {}]
  %s4 = sld [smem:[#allocation0]]
  $region57: #{tpu_custom_call.1} parent=0
    _
  %s6 = ssub.s32 1, %s4
  %s7 = scalar_select 0, %s6, %s4
  $region1: #{tpu_custom_call.1} parent=0
    #allocation4 [shape = 'u8[32768]{0}', space=vmem, size = 0x8000, scoped, tag = 'input window, operand 0']
    #allocation5 [shape = 's32[2]{0}', space=sflag, size = 0x8, scoped, tag = 'scoped memory for tpu_custom_call.1']
    #allocation6 [shape = 's32[2]{0}', space=sflag, size = 0x8, scoped, tag = 'scoped memory for tpu_custom_call.1']
    #allocation7 [shape = 'u8[1024]{0}', space=vmem, size = 0x400, scoped, tag = 'output window, operand 0']
    %8 = vsyncpa [#allocation5], 0
    %s9 = scalar_lea.sflag [#allocation5], 1
    %10 = vsyncpa %s9, 0
    %11 = vsyncpa [#allocation6], 0
    %s12 = scalar_lea.sflag [#allocation6], 1
    %13 = vsyncpa %s12, 0
    loop: start=0, step=1, limit=4
    $region2: #{tpu_custom_call.1} parent=1 // loop_pre_header
      _
    $region3: #{tpu_custom_call.1} parent=1 // loop_header
      %s15 = sphi 0, %s19
      %p16 = scmp.ge.s32.totalorder %s15, 4
      %s22 = sphi 0, %s34
      %s23 = sphi 0, %s30
      %s24 = sphi 0, %s22
      %s25 = sphi 0, %s23
      %s26 = sphi 0, %s24
      %s27 = sphi 0, %s25
      %s39 = sphi 0, %s41
      %s42 = sphi 0, %s39
      %s43 = sphi 0, %s42
      %s59 = sphi 0, %s43
      %s63 = sphi 0, %s63
      %s65 = sphi 0, %s63
      %s66 = sphi 0, %s65
      %s80 = sphi 0, %s66
      %s84 = sphi 0, %s84
      %s86 = sphi 0, %s84
      %s87 = sphi 0, %s86
      %s101 = sphi 0, %s87
      %s107 = sphi 0, %s109
      %s110 = sphi 0, %s107
      %s111 = sphi 0, %s110
      %s127 = sphi 0, %s111
    $region4: #{tpu_custom_call.1} parent=1 // loop_header_branch
      %18 = sbr.rel (%p16) target = $region8
    $region5: #{tpu_custom_call.1} parent=1 // loop_body
      %s20 = ssub.s32 %s15, 1
      %s21 = ssub.s32 %s15, 2
      %s28 = sadd.s32 1, %s23
      %p29 = scmp.ge.s32.totalorder %s28, 1
      %s30 = scalar_select %p29, 0, %s28
      %s31 = sadd.s32 1, %s22
      %s32 = scalar_select %p29, %s31, %s22
      %p33 = scmp.ge.s32.totalorder %s32, 2
      %s34 = scalar_select %p33, 0, %s32
      %s35 = ssub.s32 %s22, %s34
      %s36 = ssub.s32 %s23, %s30
      %s37 = sor.u32 %s35, %s36
      %p38 = scmp.eq.s32.totalorder %s37, 0
      %s40 = sadd.s32 %s39, 1
      %s41 = scalar_select %p38, %s39, %s40
      %p44 = pneg %p38
      %p45 = scmp.eq.s32.totalorder %s15, 1
      %p46 = por %p44, %p45
      %p47 = scmp.ne.s32.totalorder %s39, %s42
      %p48 = scmp.eq.s32.totalorder %s15, 0
      %p49 = por %p47, %p48
      %p50 = scmp.ne.s32.totalorder %s39, %s42
      %p51 = scmp.eq.s32.totalorder %s20, 1
      %p52 = por %p50, %p51
      %p53 = scmp.ne.s32.totalorder %s42, %s43
      %p54 = scmp.eq.s32.totalorder %s20, 0
      %p55 = por %p53, %p54
      %p56 = scmp.ne.s32.totalorder %s42, %s43
      %p57 = scmp.eq.s32.totalorder %s21, 1
      %p58 = por %p56, %p57
      %p60 = scmp.ne.s32.totalorder %s43, %s59
      %p61 = scmp.eq.s32.totalorder %s21, 0
      %p62 = por %p60, %p61
      %s64 = sadd.s32 %s63, 1
      %p67 = scmp.eq.s32.totalorder %s15, 1
      %p68 = scmp.ne.s32.totalorder %s63, %s65
      %p69 = scmp.eq.s32.totalorder %s15, 0
      %p70 = por %p68, %p69
      %p71 = scmp.ne.s32.totalorder %s63, %s65
      %p72 = scmp.eq.s32.totalorder %s20, 1
      %p73 = por %p71, %p72
      %p74 = scmp.ne.s32.totalorder %s65, %s66
      %p75 = scmp.eq.s32.totalorder %s20, 0
      %p76 = por %p74, %p75
      %p77 = scmp.ne.s32.totalorder %s65, %s66
      %p78 = scmp.eq.s32.totalorder %s21, 1
      %p79 = por %p77, %p78
      %p81 = scmp.ne.s32.totalorder %s66, %s80
      %p82 = scmp.eq.s32.totalorder %s21, 0
      %p83 = por %p81, %p82
      %s85 = sadd.s32 %s84, 1
      %p88 = scmp.eq.s32.totalorder %s15, 1
      %p89 = scmp.ne.s32.totalorder %s84, %s86
      %p90 = scmp.eq.s32.totalorder %s15, 0
      %p91 = por %p89, %p90
      %p92 = scmp.ne.s32.totalorder %s84, %s86
      %p93 = scmp.eq.s32.totalorder %s20, 1
      %p94 = por %p92, %p93
      %p95 = scmp.ne.s32.totalorder %s86, %s87
      %p96 = scmp.eq.s32.totalorder %s20, 0
      %p97 = por %p95, %p96
      %p98 = scmp.ne.s32.totalorder %s86, %s87
      %p99 = scmp.eq.s32.totalorder %s21, 1
      %p100 = por %p98, %p99
      %p102 = scmp.ne.s32.totalorder %s87, %s101
      %p103 = scmp.eq.s32.totalorder %s21, 0
      %p104 = por %p102, %p103
      %s105 = ssub.s32 %s22, %s34
      %p106 = scmp.eq.s32.totalorder %s105, 0
      %s108 = sadd.s32 %s107, 1
      %s109 = scalar_select %p106, %s107, %s108
      %p112 = pneg %p106
      %p113 = scmp.eq.s32.totalorder %s15, 1
      %p114 = por %p112, %p113
      %p115 = scmp.ne.s32.totalorder %s107, %s110
      %p116 = scmp.eq.s32.totalorder %s15, 0
      %p117 = por %p115, %p116
      %p118 = scmp.ne.s32.totalorder %s107, %s110
      %p119 = scmp.eq.s32.totalorder %s20, 1
      %p120 = por %p118, %p119
      %p121 = scmp.ne.s32.totalorder %s110, %s111
      %p122 = scmp.eq.s32.totalorder %s20, 0
      %p123 = por %p121, %p122
      %p124 = scmp.ne.s32.totalorder %s110, %s111
      %p125 = scmp.eq.s32.totalorder %s21, 1
      %p126 = por %p124, %p125
      %p128 = scmp.ne.s32.totalorder %s111, %s127
      %p129 = scmp.eq.s32.totalorder %s21, 0
      %p130 = por %p128, %p129
      %p131 = scmp.le.s32.totalorder 1, %s15
      %p132 = scmp.lt.s32.totalorder %s15, 3
      %p133 = pnand %p131, %p132
      %p134 = pneg %p133
      // Predicated region
      $region9: #{tpu_custom_call.1} parent=5 // pred_check
        _
      $region10: #{tpu_custom_call.1} parent=5 // pred_check_branch
        %136 = sbr.rel (%p133) target = $region12
      $region11: #{tpu_custom_call.1} parent=5 // pred_region
        %s137 = ssub.s32 %s15, 1
        // Predicated region
        $region13: #{tpu_custom_call.1} parent=11 // pred_check
          %p138 = pneg %p76
        $region14: #{tpu_custom_call.1} parent=11 // pred_check_branch
          %140 = sbr.rel (%p138) target = $region16
        $region15: #{tpu_custom_call.1} parent=11 // pred_region
          _
        $region16: #{tpu_custom_call.1} parent=11 // pred_fallthru
          _
        // Predicated region
        $region17: #{tpu_custom_call.1} parent=11 // pred_check
          %p141 = pneg %p97
        $region18: #{tpu_custom_call.1} parent=11 // pred_check_branch
          %143 = sbr.rel (%p141) target = $region20
        $region19: #{tpu_custom_call.1} parent=11 // pred_region
          _
        $region20: #{tpu_custom_call.1} parent=11 // pred_fallthru
          _
      $region12: #{tpu_custom_call.1} parent=5 // pred_fallthru
        _
      %p144 = scmp.lt.s32.totalorder %s15, 2
      // Predicated region
      $region21: #{tpu_custom_call.1} parent=5 // pred_check
        %p145 = pneg %p144
      $region22: #{tpu_custom_call.1} parent=5 // pred_check_branch
        %147 = sbr.rel (%p145) target = $region24
      $region23: #{tpu_custom_call.1} parent=5 // pred_region
        // Predicated region
        $region25: #{tpu_custom_call.1} parent=23 // pred_check
          %p148 = pneg %p49
        $region26: #{tpu_custom_call.1} parent=23 // pred_check_branch
          %150 = sbr.rel (%p148) target = $region28
        $region27: #{tpu_custom_call.1} parent=23 // pred_region
          %s151 = sand.u32 %s39, 1
          %s152 = scalar_lea.sflag [#allocation5], %s151
          %s153 = sand.u32 %s39, 1
          %s154 = smul.addr %s153, 32
          %s155 = scalar_lea.vmem [#allocation4], %s154
          %157 = vsyncadd %s152, 0
          %s158 = smul.addr %s22, 16
          %s159 = sadd.s32 %s23, %s158
          %s160 = smul.addr %s159, 2
          %s161 = scalar_lea.hbm %s0, %s160
          %s162 = sshll.u32 %s161, 4
          %s163 = int_to_ptr.hbm [resolvable:$true] %s162
          %s164 = sshll.u32 %s155, 4
          %s165 = int_to_ptr.vmem [resolvable:$true] %s164
          %170 = dma.hbm_to_vmem [thread:$0]  %s163, 512, %s165, %s152, 32, 32, 2
        $region28: #{tpu_custom_call.1} parent=23 // pred_fallthru
          _
      $region24: #{tpu_custom_call.1} parent=5 // pred_fallthru
        _
      %p171 = scmp.le.s32.totalorder 1, %s15
      %p172 = scmp.lt.s32.totalorder %s15, 3
      %p173 = pnand %p171, %p172
      %p174 = pneg %p173
      // Predicated region
      $region29: #{tpu_custom_call.1} parent=5 // pred_check
        _
      $region30: #{tpu_custom_call.1} parent=5 // pred_check_branch
        %176 = sbr.rel (%p173) target = $region32
      $region31: #{tpu_custom_call.1} parent=5 // pred_region
        %s177 = ssub.s32 %s15, 1
        %s178 = sand.u32 %s42, 1
        %s179 = scalar_lea.sflag [#allocation5], %s178
        %s180 = sand.u32 %s42, 1
        %s181 = smul.addr %s180, 32
        %s182 = scalar_lea.vmem [#allocation4], %s181
        // Predicated region
        $region33: #{tpu_custom_call.1} parent=31 // pred_check
          %p183 = pneg %p55
        $region34: #{tpu_custom_call.1} parent=31 // pred_check_branch
          %185 = sbr.rel (%p183) target = $region36
        $region35: #{tpu_custom_call.1} parent=31 // pred_region
          %187 = dma.done %s179, 512
        $region36: #{tpu_custom_call.1} parent=31 // pred_fallthru
          _
        %s188 = sand.u32 %s42, 1
        %s189 = scalar_lea.sflag [#allocation5], %s188
        %s190 = sand.u32 %s42, 1
        %s191 = smul.addr %s190, 32
        %s192 = scalar_lea.vmem [#allocation4], %s191
        %p193 = pneg %p55
        %p194 = pneg %p52
        %p195 = pneg %p76
        %p196 = pneg %p73
        %p197 = pneg %p97
        %p198 = pneg %p94
        %p199 = pneg %p123
        %p200 = pneg %p120
        %s201 = sand.u32 %s110, 1
        %s202 = scalar_lea.sflag [#allocation6], %s201
        %s203 = sand.u32 %s110, 1
        %s204 = scalar_lea.vmem [#allocation7], %s203
        %p205 = scmp.eq.s32.totalorder %s25, 0
        // Predicated region
        $region37: #{tpu_custom_call.1} parent=31 // pred_check
          %p206 = pneg %p205
        $region38: #{tpu_custom_call.1} parent=31 // pred_check_branch
          %208 = sbr.rel (%p206) target = $region40
        $region39: #{tpu_custom_call.1} parent=31 // pred_region
          %209 = vst [vmem:[#allocation2] sm:$0xff] 0.0
          %210 = vst [vmem:[#allocation2 + $0x8] sm:$0xff] 0.0
          %211 = vst [vmem:[#allocation3] sm:$0xff] -inf
          %212 = vst [vmem:[#allocation3 + $0x8] sm:$0xff] -inf
        $region40: #{tpu_custom_call.1} parent=31 // pred_fallthru
          _
        %v213 = vld [vmem:[%s182] sm:$0x3]
        %v214 = vld [vmem:[%s182 + $0x2] sm:$0x3]
        %v215 = vld [vmem:[%s182 + $0x4] sm:$0x3]
        %v216 = vld [vmem:[%s182 + $0x6] sm:$0x3]
        %v217 = vld [vmem:[%s182 + $0x8] sm:$0x3]
        %v218 = vld [vmem:[%s182 + $0xa] sm:$0x3]
        %v219 = vld [vmem:[%s182 + $0xc] sm:$0x3]
        %v220 = vld [vmem:[%s182 + $0xe] sm:$0x3]
        %v221 = vld [vmem:[%s182 + $0x10] sm:$0x3]
        %v222 = vld [vmem:[%s182 + $0x12] sm:$0x3]
        %v223 = vld [vmem:[%s182 + $0x14] sm:$0x3]
        %v224 = vld [vmem:[%s182 + $0x16] sm:$0x3]
        %v225 = vld [vmem:[%s182 + $0x18] sm:$0x3]
        %v226 = vld [vmem:[%s182 + $0x1a] sm:$0x3]
        %v227 = vld [vmem:[%s182 + $0x1c] sm:$0x3]
        %v228 = vld [vmem:[%s182 + $0x1e] sm:$0x3]
        %v229 = vld [vmem:[#allocation2] sm:$0xff]
        %v230 = vld [vmem:[#allocation2 + $0x8] sm:$0xff]
        %vm231 = vcmask 1041408
        %v232 = vsel %vm231, %v213, 0.0
        %v233 = vrot.slane %v232, 4
        %v234 = vadd.f32 %v232, %v233
        %v235 = vrot.slane %v234, 2
        %v236 = vadd.f32 %v234, %v235
        %v237 = vrot.slane %v236, 1
        %v238 = vadd.f32 %v236, %v237
        %v239 = vsel %vm231, %v214, 0.0
        %v240 = vrot.slane %v239, 4
        %v241 = vadd.f32 %v239, %v240
        %v242 = vrot.slane %v241, 2
        %v243 = vadd.f32 %v241, %v242
        %v244 = vrot.slane %v243, 1
        %v245 = vadd.f32 %v243, %v244
        %v246 = vsel %vm231, %v215, 0.0
        %v247 = vrot.slane %v246, 4
        %v248 = vadd.f32 %v246, %v247
        %v249 = vrot.slane %v248, 2
        %v250 = vadd.f32 %v248, %v249
        %v251 = vrot.slane %v250, 1
        %v252 = vadd.f32 %v250, %v251
        %v253 = vsel %vm231, %v216, 0.0
        %v254 = vrot.slane %v253, 4
        %v255 = vadd.f32 %v253, %v254
        %v256 = vrot.slane %v255, 2
        %v257 = vadd.f32 %v255, %v256
        %v258 = vrot.slane %v257, 1
        %v259 = vadd.f32 %v257, %v258
        %v260 = vsel %vm231, %v217, 0.0
        %v261 = vrot.slane %v260, 4
        %v262 = vadd.f32 %v260, %v261
        %v263 = vrot.slane %v262, 2
        %v264 = vadd.f32 %v262, %v263
        %v265 = vrot.slane %v264, 1
        %v266 = vadd.f32 %v264, %v265
        %v267 = vsel %vm231, %v218, 0.0
        %v268 = vrot.slane %v267, 4
        %v269 = vadd.f32 %v267, %v268
        %v270 = vrot.slane %v269, 2
        %v271 = vadd.f32 %v269, %v270
        %v272 = vrot.slane %v271, 1
        %v273 = vadd.f32 %v271, %v272
        %v274 = vsel %vm231, %v219, 0.0
        %v275 = vrot.slane %v274, 4
        %v276 = vadd.f32 %v274, %v275
        %v277 = vrot.slane %v276, 2
        %v278 = vadd.f32 %v276, %v277
        %v279 = vrot.slane %v278, 1
        %v280 = vadd.f32 %v278, %v279
        %v281 = vsel %vm231, %v220, 0.0
        %v282 = vrot.slane %v281, 4
        %v283 = vadd.f32 %v281, %v282
        %v284 = vrot.slane %v283, 2
        %v285 = vadd.f32 %v283, %v284
        %v286 = vrot.slane %v285, 1
        %v287 = vadd.f32 %v285, %v286
        %v288 = vsel %vm231, %v221, 0.0
        %v289 = vrot.slane %v288, 4
        %v290 = vadd.f32 %v288, %v289
        %v291 = vrot.slane %v290, 2
        %v292 = vadd.f32 %v290, %v291
        %v293 = vrot.slane %v292, 1
        %v294 = vadd.f32 %v292, %v293
        %v295 = vsel %vm231, %v222, 0.0
        %v296 = vrot.slane %v295, 4
        %v297 = vadd.f32 %v295, %v296
        %v298 = vrot.slane %v297, 2
        %v299 = vadd.f32 %v297, %v298
        %v300 = vrot.slane %v299, 1
        %v301 = vadd.f32 %v299, %v300
        %v302 = vsel %vm231, %v223, 0.0
        %v303 = vrot.slane %v302, 4
        %v304 = vadd.f32 %v302, %v303
        %v305 = vrot.slane %v304, 2
        %v306 = vadd.f32 %v304, %v305
        %v307 = vrot.slane %v306, 1
        %v308 = vadd.f32 %v306, %v307
        %v309 = vsel %vm231, %v224, 0.0
        %v310 = vrot.slane %v309, 4
        %v311 = vadd.f32 %v309, %v310
        %v312 = vrot.slane %v311, 2
        %v313 = vadd.f32 %v311, %v312
        %v314 = vrot.slane %v313, 1
        %v315 = vadd.f32 %v313, %v314
        %v316 = vsel %vm231, %v225, 0.0
        %v317 = vrot.slane %v316, 4
        %v318 = vadd.f32 %v316, %v317
        %v319 = vrot.slane %v318, 2
        %v320 = vadd.f32 %v318, %v319
        %v321 = vrot.slane %v320, 1
        %v322 = vadd.f32 %v320, %v321
        %v323 = vsel %vm231, %v226, 0.0
        %v324 = vrot.slane %v323, 4
        %v325 = vadd.f32 %v323, %v324
        %v326 = vrot.slane %v325, 2
        %v327 = vadd.f32 %v325, %v326
        %v328 = vrot.slane %v327, 1
        %v329 = vadd.f32 %v327, %v328
        %v330 = vsel %vm231, %v227, 0.0
        %v331 = vrot.slane %v330, 4
        %v332 = vadd.f32 %v330, %v331
        %v333 = vrot.slane %v332, 2
        %v334 = vadd.f32 %v332, %v333
        %v335 = vrot.slane %v334, 1
        %v336 = vadd.f32 %v334, %v335
        %v337 = vsel %vm231, %v228, 0.0
        %v338 = vrot.slane %v337, 4
        %v339 = vadd.f32 %v337, %v338
        %v340 = vrot.slane %v339, 2
        %v341 = vadd.f32 %v339, %v340
        %v342 = vrot.slane %v341, 1
        %v343 = vadd.f32 %v341, %v342
        %vm360 = vcmask 1041409
        %v361 = vsel %vm360, %v245, %v238
        %vm362 = vcmask 1042434
        %v363 = vsel %vm362, %v252, %v361
        %vm364 = vcmask 1043459
        %v365 = vsel %vm364, %v259, %v363
        %vm366 = vcmask 1044484
        %v367 = vsel %vm366, %v266, %v365
        %vm368 = vcmask 1045509
        %v369 = vsel %vm368, %v273, %v367
        %vm370 = vcmask 1046534
        %v371 = vsel %vm370, %v280, %v369
        %vm372 = vcmask 1047559
        %v373 = vsel %vm372, %v287, %v371
        %v374 = vsel %vm360, %v301, %v294
        %v375 = vsel %vm362, %v308, %v374
        %v376 = vsel %vm364, %v315, %v375
        %v377 = vsel %vm366, %v322, %v376
        %v378 = vsel %vm368, %v329, %v377
        %v379 = vsel %vm370, %v336, %v378
        %v380 = vsel %vm372, %v343, %v379
        %v383 = vadd.f32 %v229, %v373
        %v384 = vadd.f32 %v230, %v380
        %385 = vst [vmem:[#allocation2] sm:$0xff] %v383
        %386 = vst [vmem:[#allocation2 + $0x8] sm:$0xff] %v384
        %v387 = vld [vmem:[#allocation3] sm:$0xff]
        %v388 = vld [vmem:[#allocation3 + $0x8] sm:$0xff]
        %v389 = vsel %vm231, %v213, -inf
        %v390 = vrot.slane %v389, 4
        %v391 = vmax.f32 %v389, %v390
        %v392 = vrot.slane %v391, 2
        %v393 = vmax.f32 %v391, %v392
        %v394 = vrot.slane %v393, 1
        %v395 = vmax.f32 %v393, %v394
        %v396 = vsel %vm231, %v214, -inf
        %v397 = vrot.slane %v396, 4
        %v398 = vmax.f32 %v396, %v397
        %v399 = vrot.slane %v398, 2
        %v400 = vmax.f32 %v398, %v399
        %v401 = vrot.slane %v400, 1
        %v402 = vmax.f32 %v400, %v401
        %v403 = vsel %vm231, %v215, -inf
        %v404 = vrot.slane %v403, 4
        %v405 = vmax.f32 %v403, %v404
        %v406 = vrot.slane %v405, 2
        %v407 = vmax.f32 %v405, %v406
        %v408 = vrot.slane %v407, 1
        %v409 = vmax.f32 %v407, %v408
        %v410 = vsel %vm231, %v216, -inf
        %v411 = vrot.slane %v410, 4
        %v412 = vmax.f32 %v410, %v411
        %v413 = vrot.slane %v412, 2
        %v414 = vmax.f32 %v412, %v413
        %v415 = vrot.slane %v414, 1
        %v416 = vmax.f32 %v414, %v415
        %v417 = vsel %vm231, %v217, -inf
        %v418 = vrot.slane %v417, 4
        %v419 = vmax.f32 %v417, %v418
        %v420 = vrot.slane %v419, 2
        %v421 = vmax.f32 %v419, %v420
        %v422 = vrot.slane %v421, 1
        %v423 = vmax.f32 %v421, %v422
        %v424 = vsel %vm231, %v218, -inf
        %v425 = vrot.slane %v424, 4
        %v426 = vmax.f32 %v424, %v425
        %v427 = vrot.slane %v426, 2
        %v428 = vmax.f32 %v426, %v427
        %v429 = vrot.slane %v428, 1
        %v430 = vmax.f32 %v428, %v429
        %v431 = vsel %vm231, %v219, -inf
        %v432 = vrot.slane %v431, 4
        %v433 = vmax.f32 %v431, %v432
        %v434 = vrot.slane %v433, 2
        %v435 = vmax.f32 %v433, %v434
        %v436 = vrot.slane %v435, 1
        %v437 = vmax.f32 %v435, %v436
        %v438 = vsel %vm231, %v220, -inf
        %v439 = vrot.slane %v438, 4
        %v440 = vmax.f32 %v438, %v439
        %v441 = vrot.slane %v440, 2
        %v442 = vmax.f32 %v440, %v441
        %v443 = vrot.slane %v442, 1
        %v444 = vmax.f32 %v442, %v443
        %v445 = vsel %vm231, %v221, -inf
        %v446 = vrot.slane %v445, 4
        %v447 = vmax.f32 %v445, %v446
        %v448 = vrot.slane %v447, 2
        %v449 = vmax.f32 %v447, %v448
        %v450 = vrot.slane %v449, 1
        %v451 = vmax.f32 %v449, %v450
        %v452 = vsel %vm231, %v222, -inf
        %v453 = vrot.slane %v452, 4
        %v454 = vmax.f32 %v452, %v453
        %v455 = vrot.slane %v454, 2
        %v456 = vmax.f32 %v454, %v455
        %v457 = vrot.slane %v456, 1
        %v458 = vmax.f32 %v456, %v457
        %v459 = vsel %vm231, %v223, -inf
        %v460 = vrot.slane %v459, 4
        %v461 = vmax.f32 %v459, %v460
        %v462 = vrot.slane %v461, 2
        %v463 = vmax.f32 %v461, %v462
        %v464 = vrot.slane %v463, 1
        %v465 = vmax.f32 %v463, %v464
        %v466 = vsel %vm231, %v224, -inf
        %v467 = vrot.slane %v466, 4
        %v468 = vmax.f32 %v466, %v467
        %v469 = vrot.slane %v468, 2
        %v470 = vmax.f32 %v468, %v469
        %v471 = vrot.slane %v470, 1
        %v472 = vmax.f32 %v470, %v471
        %v473 = vsel %vm231, %v225, -inf
        %v474 = vrot.slane %v473, 4
        %v475 = vmax.f32 %v473, %v474
        %v476 = vrot.slane %v475, 2
        %v477 = vmax.f32 %v475, %v476
        %v478 = vrot.slane %v477, 1
        %v479 = vmax.f32 %v477, %v478
        %v480 = vsel %vm231, %v226, -inf
        %v481 = vrot.slane %v480, 4
        %v482 = vmax.f32 %v480, %v481
        %v483 = vrot.slane %v482, 2
        %v484 = vmax.f32 %v482, %v483
        %v485 = vrot.slane %v484, 1
        %v486 = vmax.f32 %v484, %v485
        %v487 = vsel %vm231, %v227, -inf
        %v488 = vrot.slane %v487, 4
        %v489 = vmax.f32 %v487, %v488
        %v490 = vrot.slane %v489, 2
        %v491 = vmax.f32 %v489, %v490
        %v492 = vrot.slane %v491, 1
        %v493 = vmax.f32 %v491, %v492
        %v494 = vsel %vm231, %v228, -inf
        %v495 = vrot.slane %v494, 4
        %v496 = vmax.f32 %v494, %v495
        %v497 = vrot.slane %v496, 2
        %v498 = vmax.f32 %v496, %v497
        %v499 = vrot.slane %v498, 1
        %v500 = vmax.f32 %v498, %v499
        %v517 = vsel %vm360, %v402, %v395
        %v518 = vsel %vm362, %v409, %v517
        %v519 = vsel %vm364, %v416, %v518
        %v520 = vsel %vm366, %v423, %v519
        %v521 = vsel %vm368, %v430, %v520
        %v522 = vsel %vm370, %v437, %v521
        %v523 = vsel %vm372, %v444, %v522
        %v524 = vsel %vm360, %v458, %v451
        %v525 = vsel %vm362, %v465, %v524
        %v526 = vsel %vm364, %v472, %v525
        %v527 = vsel %vm366, %v479, %v526
        %v528 = vsel %vm368, %v486, %v527
        %v529 = vsel %vm370, %v493, %v528
        %v530 = vsel %vm372, %v500, %v529
        %v533 = vmax.f32 %v387, %v523
        %v534 = vmax.f32 %v388, %v530
        %535 = vst [vmem:[#allocation3] sm:$0xff] %v533
        %536 = vst [vmem:[#allocation3 + $0x8] sm:$0xff] %v534
        // Predicated region
        $region41: #{tpu_custom_call.1} parent=31 // pred_check
          %p537 = pneg %p205
        $region42: #{tpu_custom_call.1} parent=31 // pred_check_branch
          %539 = sbr.rel (%p537) target = $region44
        $region43: #{tpu_custom_call.1} parent=31 // pred_region
          %v540 = vld [vmem:[#allocation2] sm:$0xff]
          %v541 = vld [vmem:[#allocation2 + $0x8] sm:$0xff]
          %542 = vadd.xlane.f32.xlu0 %v540
          %v543 = vpop.xlane.xlu0 %542
          %544 = vadd.xlane.f32.xlu0 %v541
          %v545 = vpop.xlane.xlu0 %544
          %v546 = vmul.f32 %v543, 0.00390625
          %v547 = vmul.f32 %v545, 0.00390625
          %v548 = vld [vmem:[#allocation3] sm:$0xff]
          %v549 = vld [vmem:[#allocation3 + $0x8] sm:$0xff]
          %550 = vmax.xlane.f32.xlu0 %v548
          %v551 = vpop.xlane.xlu0 %550
          %552 = vmax.xlane.f32.xlu0 %v549
          %v553 = vpop.xlane.xlu0 %552
          %v556 = vlaneseq
          %v557 = vand.u32 %v556, 127
          %v558 = vperm.slane %v546, %v557
          %v559 = vadd.s32 %v557, 4294967288
          %v560 = vperm.slane %v547, %v559
          %vm561 = vcmask 130112
          %v562 = vsel %vm561, %v560, %v558
          %v566 = vperm.slane %v551, %v557
          %v567 = vperm.slane %v553, %v559
          %v568 = vsel %vm561, %v567, %v566
          %vm570 = vcmask 1040384
          %v571 = vsel %vm570, %v562, %v568
          %v572 = vld [vmem:[%s1] sm:$0xff]
          %v573 = vld [vmem:[%s1 + $0x8] sm:$0xff]
          %v574 = vld [vmem:[%s2] sm:$0x3]
          %vm575 = vcmask 130048
          %v577 = vsel %vm575, %v571, 0
          %579 = vmatpush.msra.mxu0 0.0
          %580 = vmatpush.msra.mxu0 0.0
          %581 = vmatpush.msra.mxu0 0.0
          %582 = vmatpush.msra.mxu0 0.0
          %583 = vmatpush.msra.mxu0 0.0
          %584 = vmatpush.msra.mxu0 0.0
          %585 = vmatpush.msra.mxu0 0.0
          %586 = vmatpush.msra.mxu0 0.0
          %587 = vmatpush.msra.mxu0 0.0
          %588 = vmatpush.msra.mxu0 0.0
          %589 = vmatpush.msra.mxu0 0.0
          %590 = vmatpush.msra.mxu0 0.0
          %591 = vmatpush.msra.mxu0 0.0
          %592 = vmatpush.msra.mxu0 0.0
          %593 = vmatpush.msra.mxu0 %v573
          %594 = vmatpush.msra.mxu0 %v572
          %595 = vmatmul.f32.gmra.mxu0 %v577
          %v596 = vpop.f32.mrf.mxu0
          %v597 = vadd.f32 0.0, %v596
          %598 = vdwg.mxu0
          %v599 = vmax.f32 %v597, 0.0
          %vm600 = vcmask 15360
          %v602 = vsel %vm600, %v599, 0
          %v605 = vsel %vm231, %v574, 0
          %607 = vmatpush.msra.mxu0 0.0
          %608 = vmatpush.msra.mxu0 0.0
          %609 = vmatpush.msra.mxu0 0.0
          %610 = vmatpush.msra.mxu0 0.0
          %611 = vmatpush.msra.mxu0 0.0
          %612 = vmatpush.msra.mxu0 0.0
          %613 = vmatpush.msra.mxu0 0.0
          %614 = vmatpush.msra.mxu0 0.0
          %615 = vmatpush.msra.mxu0 0.0
          %616 = vmatpush.msra.mxu0 0.0
          %617 = vmatpush.msra.mxu0 0.0
          %618 = vmatpush.msra.mxu0 0.0
          %619 = vmatpush.msra.mxu0 0.0
          %620 = vmatpush.msra.mxu0 0.0
          %621 = vmatpush.msra.mxu0 0.0
          %622 = vmatpush.msra.mxu0 %v605
          %623 = vmatmul.f32.gmra.mxu0 %v602
          %v624 = vpop.f32.mrf.mxu0
          %v625 = vadd.f32 0.0, %v624
          %626 = vdwg.mxu0
          %v628 = vrot.slane %v625, 1
          %v630 = vadd.f32 %v625, %v628
          %v631 = vxor.u32 %v630, 2147483648
          %v632 = vmul.f32 %v631, 1.442695
          %v633 = vpow.pop %v632
          %v634 = vadd.f32 %v633, 1.0
          %v635 = vrcp.pop %v634
          %v636 = vmul.f32 %v634, %v635
          %v637 = vsub.f32 1.0, %v636
          %v638 = vmul.f32 %v635, %v637
          %v639 = vadd.f32 %v635, %v638
          %vm640 = vweird.f32 %v634
          %vm641 = vweird.f32 %v635
          %vm642 = vmor %vm640, %vm641
          %v643 = vsel %vm642, %v635, %v639
          %v644 = vand.u32 2147483647, %v634
          %vm645 = vcmp.eq.f32.partialorder %v644, 8.507059e+37
          %v646 = vand.u32 %v634, 2147483648
          %v647 = vor.u32 1.1754944e-38, %v646
          %v648 = vsel %vm645, %v647, %v643
          %v649 = vmul.f32 1.0, %v648
          %vm650 = vcmask 122880
          %651 = vst.msk [vmem:[%s204] sm:$0x1] %vm650, %v649
        $region44: #{tpu_custom_call.1} parent=31 // pred_fallthru
          _
        %s652 = sand.u32 %s110, 1
        %s653 = scalar_lea.sflag [#allocation6], %s652
        %s654 = sand.u32 %s110, 1
        %s655 = scalar_lea.vmem [#allocation7], %s654
        // Predicated region
        $region45: #{tpu_custom_call.1} parent=31 // pred_check
          %p656 = pneg %p120
        $region46: #{tpu_custom_call.1} parent=31 // pred_check_branch
          %658 = sbr.rel (%p656) target = $region48
        $region47: #{tpu_custom_call.1} parent=31 // pred_region
          %660 = vsyncadd %s653, 0
          %s661 = scalar_lea.hbm %s3, %s24
          %s663 = sshll.u32 %s655, 4
          %s664 = int_to_ptr.vmem [resolvable:$true] %s663
          %s665 = sshll.u32 %s661, 4
          %s666 = int_to_ptr.hbm [resolvable:$true] %s665
          %668 = dma.vmem_to_hbm [thread:$0]  %s664, 16, %s666, %s653
        $region48: #{tpu_custom_call.1} parent=31 // pred_fallthru
          _
      $region32: #{tpu_custom_call.1} parent=5 // pred_fallthru
        _
      %p669 = scmp.le.s32.totalorder 2, %s15
      // Predicated region
      $region49: #{tpu_custom_call.1} parent=5 // pred_check
        %p670 = pneg %p669
      $region50: #{tpu_custom_call.1} parent=5 // pred_check_branch
        %672 = sbr.rel (%p670) target = $region52
      $region51: #{tpu_custom_call.1} parent=5 // pred_region
        %s673 = ssub.s32 %s15, 2
        // Predicated region
        $region53: #{tpu_custom_call.1} parent=51 // pred_check
          %p674 = pneg %p126
        $region54: #{tpu_custom_call.1} parent=51 // pred_check_branch
          %676 = sbr.rel (%p674) target = $region56
        $region55: #{tpu_custom_call.1} parent=51 // pred_region
          %s677 = sand.u32 %s111, 1
          %s678 = scalar_lea.sflag [#allocation6], %s677
          %s679 = sand.u32 %s111, 1
          %s680 = scalar_lea.vmem [#allocation7], %s679
          %682 = dma.done %s678, 16
        $region56: #{tpu_custom_call.1} parent=51 // pred_fallthru
          _
      $region52: #{tpu_custom_call.1} parent=5 // pred_fallthru
        _
    $region6: #{tpu_custom_call.1} parent=1 // loop_footer
      %s19 = sadd.s32 1, %s15
    $region7: #{tpu_custom_call.1} parent=1 // loop_footer_branch
      %14 = sbr.rel target = $region3
    $region8: #{tpu_custom_call.1} parent=1 // loop_exit
      _
    %683 = vsyncpa [#allocation5], 1
    %s684 = scalar_lea.sflag [#allocation5], 1
    %685 = vsyncpa %s684, 1
    %686 = vsyncpa [#allocation6], 1
    %s687 = scalar_lea.sflag [#allocation6], 1
    %688 = vsyncpa %s687, 1

</llo_original>
